<compile_context>
chip_gen: v5e
topology: v5e:2x2
jax: 0.10.0
libtpu: 0.0.40
codegen_flags: <defaults>
</compile_context>

<pallas_src>
import functools

import jax
import jax.numpy as jnp
from jax.experimental import pallas as pl
from jax.experimental.pallas import tpu as pltpu

LANE = 128
SUBLANE = 8
IN_FEATURES = 8


def _round_up(n, m):
    return ((n + m - 1) // m) * m


def _activation(h, activation):
    if activation == "relu":
        return jnp.maximum(h, 0.0)
    elif activation == "sigmoid":
        return jax.nn.sigmoid(h)
    raise ValueError(f"unknown activation: {activation}")


def _mlp_kernel(*refs, num_layers, activation, compute_dtype, unroll):
    # refs = (xT, w_in, b_in, [w_h, b_h,] w_out, b_out, out)
    xT_ref = refs[0]
    w_in_ref, b_in_ref = refs[1], refs[2]
    if num_layers > 0:
        w_h_ref, b_h_ref = refs[3], refs[4]
        w_out_ref, b_out_ref = refs[5], refs[6]
    else:
        w_h_ref = b_h_ref = None
        w_out_ref, b_out_ref = refs[3], refs[4]
    o_ref = refs[-1]

    def dense(w, h, b):
        # MXU matmul (bf16 or f32 operands), f32 accumulation, f32 bias add.
        acc = jnp.dot(
            w.astype(compute_dtype),
            h.astype(compute_dtype),
            preferred_element_type=jnp.float32,
        )
        return acc + b  # b: (rows, 1) broadcast across the batch lanes

    # h: (features, TB) — batch on lanes.
    h = dense(w_in_ref[...], xT_ref[...], b_in_ref[...])  # first Linear, no act

    if num_layers > 0:
        if unroll:
            for i in range(num_layers):
                h = _activation(dense(w_h_ref[i], h, b_h_ref[i]), activation)
        else:
            def body(i, h):
                return _activation(dense(w_h_ref[i], h, b_h_ref[i]), activation)
            h = jax.lax.fori_loop(0, num_layers, body, h)

    out = dense(w_out_ref[...], h, b_out_ref[...])   # (8, TB), row 0 is real
    o_ref[...] = jax.nn.sigmoid(out)                 # final sigmoid


def init_params(key, num_layers, num_units, in_features=IN_FEATURES, out_features=1):
    """Synthetic parameters in PyTorch Linear layout: w is (out, in), b is (out, 1)."""
    dims = [in_features] + [num_units] * (num_layers + 1) + [out_features]
    params = []
    for d_in, d_out in zip(dims[:-1], dims[1:]):
        key, kw, kb = jax.random.split(key, 3)
        scale = 1.0 / jnp.sqrt(jnp.float32(d_in))
        w = jax.random.uniform(kw, (d_out, d_in), jnp.float32, -scale, scale)
        b = jax.random.uniform(kb, (d_out, 1), jnp.float32, -scale, scale)
        params += [w, b]
    return params


def mlp_forward(x, params, *, num_layers, activation, block_batch=1024,
                use_bf16=True):
    """Whole-MLP forward in one Pallas kernel (batch on lanes, resident weights).

    params: [w0, b0, w1, b1, ..., w_out, b_out]; w is (out, in), b is (out, 1).
    """
    B, F = x.shape
    U = params[0].shape[0]
    O = params[-2].shape[0]

    U_pad = _round_up(U, LANE)
    O_rows = _round_up(O, SUBLANE)

    weight_dtype = jnp.bfloat16 if use_bf16 else jnp.float32
    wbytes = 2 if use_bf16 else 4

    # ---- VMEM budget & batch-tile sizing ------------------------------------
    def est_vmem(tb):
        # resident weights/biases (double-buffered by the pipeline helper)
        w_res = (U_pad * LANE + num_layers * U_pad * U_pad + O_rows * U_pad) * wbytes
        b_res = (num_layers + 2) * U_pad * LANE * 4   # (rows, 1) lane-pads to 128
        io = 2 * (2 * SUBLANE * tb * wbytes) + 2 * (O_rows * tb * 4)
        act = 4 * U_pad * tb * 4                      # live f32 activations
        return 2 * (w_res + b_res) + io + act

    try:
        vmem_cap = int(pltpu.get_tpu_info().vmem_capacity_bytes)
    except Exception:
        vmem_cap = 64 * 1024 * 1024                   # v7x physical (smallest)
    budget = int(0.9 * vmem_cap)

    TB = max(LANE, _round_up(min(block_batch, max(B, 1)), LANE))
    while est_vmem(TB) > budget // 2 and TB > LANE:
        TB = max(LANE, (TB // 2) // LANE * LANE)
    # >= 2 grid steps when the batch allows (v7x megacore sharding)
    TB = min(TB, max(LANE, _round_up(pl.cdiv(B, 2), LANE)))
    # prefer a tile that divides B exactly -> no padded HBM copy of x
    if B % TB != 0:
        for cand in range(TB, LANE - 1, -LANE):
            if B % cand == 0:
                TB = cand
                break
    B_pad = _round_up(B, TB)
    grid = (B_pad // TB,)

    # always pass an explicit scoped-VMEM limit (v5e default is only 16 MiB)
    vmem_limit = int(min(budget, max(2 * est_vmem(TB), 32 * 1024 * 1024)))

    # ---- pad parameters (zero padding keeps extra rows/cols inert) ----------
    def pad2(a, rows, cols):
        return jnp.pad(a, ((0, rows - a.shape[0]), (0, cols - a.shape[1])))

    xT = x.T                                          # (F, B): batch on lanes
    if B_pad != B:
        xT = jnp.pad(xT, ((0, 0), (0, B_pad - B)))
    xT = xT.astype(weight_dtype)                      # half-size stream if bf16

    w_in = pad2(params[0], U_pad, F).astype(weight_dtype)     # (U_pad, F)
    b_in = pad2(params[1], U_pad, 1)                           # f32
    w_out = pad2(params[-2], O_rows, U_pad).astype(weight_dtype)
    b_out = pad2(params[-1], O_rows, 1)

    inputs = [xT, w_in, b_in]
    in_specs = [
        pl.BlockSpec((F, TB), lambda i: (0, i)),
        pl.BlockSpec((U_pad, F), lambda i: (0, 0)),
        pl.BlockSpec((U_pad, 1), lambda i: (0, 0)),
    ]
    if num_layers > 0:
        w_h = jnp.stack(
            [pad2(params[2 + 2 * i], U_pad, U_pad) for i in range(num_layers)]
        ).astype(weight_dtype)
        b_h = jnp.stack(
            [pad2(params[3 + 2 * i], U_pad, 1) for i in range(num_layers)]
        )
        inputs += [w_h, b_h]
        in_specs += [
            pl.BlockSpec((num_layers, U_pad, U_pad), lambda i: (0, 0, 0)),
            pl.BlockSpec((num_layers, U_pad, 1), lambda i: (0, 0, 0)),
        ]
    inputs += [w_out, b_out]
    in_specs += [
        pl.BlockSpec((O_rows, U_pad), lambda i: (0, 0)),
        pl.BlockSpec((O_rows, 1), lambda i: (0, 0)),
    ]

    kernel = functools.partial(
        _mlp_kernel,
        num_layers=num_layers,
        activation=activation,
        compute_dtype=weight_dtype,
        unroll=num_layers <= 4,
    )

    out = pl.pallas_call(
        kernel,
        out_shape=jax.ShapeDtypeStruct((O_rows, B_pad), jnp.float32),
        grid=grid,
        in_specs=in_specs,
        out_specs=pl.BlockSpec((O_rows, TB), lambda i: (0, i)),
        compiler_params=pltpu.CompilerParams(
            dimension_semantics=("parallel",),
            vmem_limit_bytes=vmem_limit,
        ),
    )(*inputs)

    # strip row padding, drop padded batch columns, transpose back to (B, O)
    return out[:O, :B].T


if __name__ == "__main__":
    # Architecture hyperparameters (as chosen by the genetic search).
    num_layers = 2
    num_units = 32
    activation = "relu"

    key = jax.random.PRNGKey(0)
    key, kx = jax.random.split(key)

    B, F = 512, IN_FEATURES  # batch exercises a 2-step grid (256-lane tiles)
    x = jax.random.normal(kx, (B, F), jnp.float32)
    params = init_params(key, num_layers, num_units, in_features=F, out_features=1)

    # Pure-JAX reference (f32, highest-precision matmuls).
    def ref_forward(x, params):
        hp = jax.lax.Precision.HIGHEST
        h = jnp.dot(x, params[0].T, precision=hp) + params[1].T
        for i in range(num_layers):
            h = jnp.dot(h, params[2 + 2 * i].T, precision=hp) + params[3 + 2 * i].T
            h = jnp.maximum(h, 0.0) if activation == "relu" else jax.nn.sigmoid(h)
        out = jnp.dot(h, params[-2].T, precision=hp) + params[-1].T
        return jax.nn.sigmoid(out)

    y_ref = ref_forward(x, params)

    # Default (bf16 MXU operands, f32 accumulation).
    y_bf16 = jax.block_until_ready(
        mlp_forward(x, params, num_layers=num_layers, activation=activation))
    assert y_bf16.shape == (B, 1), y_bf16.shape
    assert jnp.allclose(y_bf16, y_ref, atol=2e-2, rtol=0.0), "bf16 path mismatch"

    # f32 path (matches PyTorch numerics closely).
    y_f32 = jax.block_until_ready(
        mlp_forward(x, params, num_layers=num_layers, activation=activation,
                    use_bf16=False))
    assert y_f32.shape == (B, 1), y_f32.shape
    assert jnp.allclose(y_f32, y_ref, atol=2e-3, rtol=0.0), "f32 path mismatch"

    print("KERNEL_OK")
</pallas_src>

<mosaic_0001>
module attributes {stable_mosaic.version = 11 : i64} {
  func.func @_mlp_kernel(%arg0: i32, %arg1: memref<8x256xbf16, #tpu.memory_space<vmem>>, %arg2: memref<128x8xbf16, #tpu.memory_space<vmem>>, %arg3: memref<128x1xf32, #tpu.memory_space<vmem>>, %arg4: memref<2x128x128xbf16, #tpu.memory_space<vmem>>, %arg5: memref<2x128x1xf32, #tpu.memory_space<vmem>>, %arg6: memref<8x128xbf16, #tpu.memory_space<vmem>>, %arg7: memref<8x1xf32, #tpu.memory_space<vmem>>, %arg8: memref<8x256xf32, #tpu.memory_space<vmem>>) attributes {dimension_semantics = [#tpu.dimension_semantics<parallel>], iteration_bounds = array<i64: 2>, scalar_prefetch = 0 : i64, scratch_operands = 0 : i64, tpu.core_type = #tpu.core_type<tc>, window_params = [{transform_indices = @transform_0, window_bounds = array<i64: 8, 256>}, {pipeline_mode = #tpu.pipeline_mode<synchronous>, transform_indices = @transform_1, window_bounds = array<i64: 128, 8>}, {pipeline_mode = #tpu.pipeline_mode<synchronous>, transform_indices = @transform_2, window_bounds = array<i64: 128, 1>}, {pipeline_mode = #tpu.pipeline_mode<synchronous>, transform_indices = @transform_3, window_bounds = array<i64: 2, 128, 128>}, {pipeline_mode = #tpu.pipeline_mode<synchronous>, transform_indices = @transform_4, window_bounds = array<i64: 2, 128, 1>}, {pipeline_mode = #tpu.pipeline_mode<synchronous>, transform_indices = @transform_5, window_bounds = array<i64: 8, 128>}, {pipeline_mode = #tpu.pipeline_mode<synchronous>, transform_indices = @transform_6, window_bounds = array<i64: 8, 1>}, {transform_indices = @transform_7, window_bounds = array<i64: 8, 256>}]} {
    %c0 = arith.constant 0 : index
    %c0_0 = arith.constant 0 : index
    %0 = vector.load %arg2[%c0, %c0_0] : memref<128x8xbf16, #tpu.memory_space<vmem>>, vector<128x8xbf16>
    %c0_1 = arith.constant 0 : index
    %c0_2 = arith.constant 0 : index
    %1 = vector.load %arg1[%c0_1, %c0_2] : memref<8x256xbf16, #tpu.memory_space<vmem>>, vector<8x256xbf16>
    %c0_3 = arith.constant 0 : index
    %c0_4 = arith.constant 0 : index
    %2 = vector.load %arg3[%c0_3, %c0_4] : memref<128x1xf32, #tpu.memory_space<vmem>>, vector<128x1xf32>
    %cst = arith.constant dense<0.000000e+00> : vector<128x256xf32>
    %3 = tpu.matmul %0, %1, %cst {dimension_numbers = #tpu.dot_dimension_numbers<[1], [0], [0], [1], [0, 0, 1, 1], [], []>} : vector<128x8xbf16>, vector<8x256xbf16>, vector<128x256xf32> -> vector<128x256xf32>
    %4 = vector.broadcast %2 : vector<128x1xf32> to vector<128x256xf32>
    %5 = arith.addf %3, %4 : vector<128x256xf32>
    %c0_5 = arith.constant 0 : index
    %c0_6 = arith.constant 0 : index
    %c0_7 = arith.constant 0 : index
    %6 = vector.load %arg4[%c0_5, %c0_6, %c0_7] : memref<2x128x128xbf16, #tpu.memory_space<vmem>>, vector<1x128x128xbf16>
    %7 = vector.shape_cast %6 : vector<1x128x128xbf16> to vector<128x128xbf16>
    %c0_8 = arith.constant 0 : index
    %c0_9 = arith.constant 0 : index
    %c0_10 = arith.constant 0 : index
    %8 = vector.load %arg5[%c0_8, %c0_9, %c0_10] : memref<2x128x1xf32, #tpu.memory_space<vmem>>, vector<1x128x1xf32>
    %9 = vector.shape_cast %8 : vector<1x128x1xf32> to vector<128x1xf32>
    %10 = arith.truncf %5 : vector<128x256xf32> to vector<128x256xbf16>
    %cst_11 = arith.constant dense<0.000000e+00> : vector<128x256xf32>
    %11 = tpu.matmul %7, %10, %cst_11 {dimension_numbers = #tpu.dot_dimension_numbers<[1], [0], [0], [1], [0, 0, 1, 1], [], []>} : vector<128x128xbf16>, vector<128x256xbf16>, vector<128x256xf32> -> vector<128x256xf32>
    %12 = vector.broadcast %9 : vector<128x1xf32> to vector<128x256xf32>
    %13 = arith.addf %11, %12 : vector<128x256xf32>
    %cst_12 = arith.constant 0.000000e+00 : f32
    %14 = vector.broadcast %cst_12 : f32 to vector<128x256xf32>
    %15 = arith.maximumf %13, %14 : vector<128x256xf32>
    %c1 = arith.constant 1 : index
    %c0_13 = arith.constant 0 : index
    %c0_14 = arith.constant 0 : index
    %16 = vector.load %arg4[%c1, %c0_13, %c0_14] : memref<2x128x128xbf16, #tpu.memory_space<vmem>>, vector<1x128x128xbf16>
    %17 = vector.shape_cast %16 : vector<1x128x128xbf16> to vector<128x128xbf16>
    %c1_15 = arith.constant 1 : index
    %c0_16 = arith.constant 0 : index
    %c0_17 = arith.constant 0 : index
    %18 = vector.load %arg5[%c1_15, %c0_16, %c0_17] : memref<2x128x1xf32, #tpu.memory_space<vmem>>, vector<1x128x1xf32>
    %19 = vector.shape_cast %18 : vector<1x128x1xf32> to vector<128x1xf32>
    %20 = arith.truncf %15 : vector<128x256xf32> to vector<128x256xbf16>
    %cst_18 = arith.constant dense<0.000000e+00> : vector<128x256xf32>
    %21 = tpu.matmul %17, %20, %cst_18 {dimension_numbers = #tpu.dot_dimension_numbers<[1], [0], [0], [1], [0, 0, 1, 1], [], []>} : vector<128x128xbf16>, vector<128x256xbf16>, vector<128x256xf32> -> vector<128x256xf32>
    %22 = vector.broadcast %19 : vector<128x1xf32> to vector<128x256xf32>
    %23 = arith.addf %21, %22 : vector<128x256xf32>
    %cst_19 = arith.constant 0.000000e+00 : f32
    %24 = vector.broadcast %cst_19 : f32 to vector<128x256xf32>
    %25 = arith.maximumf %23, %24 : vector<128x256xf32>
    %c0_20 = arith.constant 0 : index
    %c0_21 = arith.constant 0 : index
    %26 = vector.load %arg6[%c0_20, %c0_21] : memref<8x128xbf16, #tpu.memory_space<vmem>>, vector<8x128xbf16>
    %c0_22 = arith.constant 0 : index
    %c0_23 = arith.constant 0 : index
    %27 = vector.load %arg7[%c0_22, %c0_23] : memref<8x1xf32, #tpu.memory_space<vmem>>, vector<8x1xf32>
    %28 = arith.truncf %25 : vector<128x256xf32> to vector<128x256xbf16>
    %cst_24 = arith.constant dense<0.000000e+00> : vector<8x256xf32>
    %29 = tpu.matmul %26, %28, %cst_24 {dimension_numbers = #tpu.dot_dimension_numbers<[1], [0], [0], [1], [0, 0, 1, 1], [], []>} : vector<8x128xbf16>, vector<128x256xbf16>, vector<8x256xf32> -> vector<8x256xf32>
    %30 = vector.broadcast %27 : vector<8x1xf32> to vector<8x256xf32>
    %31 = arith.addf %29, %30 : vector<8x256xf32>
    %32 = arith.negf %31 : vector<8x256xf32>
    %33 = math.exp %32 : vector<8x256xf32>
    %cst_25 = arith.constant 1.000000e+00 : f32
    %34 = vector.broadcast %cst_25 : f32 to vector<8x256xf32>
    %35 = arith.addf %34, %33 : vector<8x256xf32>
    %36 = arith.divf %34, %35 : vector<8x256xf32>
    %c0_26 = arith.constant 0 : index
    %c0_27 = arith.constant 0 : index
    %37 = vector.load %arg8[%c0_26, %c0_27] : memref<8x256xf32, #tpu.memory_space<vmem>>, vector<8x256xf32>
    tpu.vector_store %arg8[%c0_26, %c0_27], %36 {strides = array<i32>} : memref<8x256xf32, #tpu.memory_space<vmem>>, vector<8x256xf32>,
    return
  }
  func.func @transform_0(%arg0: i32) -> (i32, i32) {
    %c0_i32 = arith.constant 0 : i32
    %c0_i32_0 = arith.constant 0 : i32
    return %c0_i32, %arg0 : i32, i32
  }
  func.func @transform_1(%arg0: i32) -> (i32, i32) {
    %c0_i32 = arith.constant 0 : i32
    %c0_i32_0 = arith.constant 0 : i32
    %c0_i32_1 = arith.constant 0 : i32
    return %c0_i32, %c0_i32_0 : i32, i32
  }
  func.func @transform_2(%arg0: i32) -> (i32, i32) {
    %c0_i32 = arith.constant 0 : i32
    %c0_i32_0 = arith.constant 0 : i32
    %c0_i32_1 = arith.constant 0 : i32
    return %c0_i32, %c0_i32_0 : i32, i32
  }
  func.func @transform_3(%arg0: i32) -> (i32, i32, i32) {
    %c0_i32 = arith.constant 0 : i32
    %c0_i32_0 = arith.constant 0 : i32
    %c0_i32_1 = arith.constant 0 : i32
    %c0_i32_2 = arith.constant 0 : i32
    return %c0_i32, %c0_i32_0, %c0_i32_1 : i32, i32, i32
  }
  func.func @transform_4(%arg0: i32) -> (i32, i32, i32) {
    %c0_i32 = arith.constant 0 : i32
    %c0_i32_0 = arith.constant 0 : i32
    %c0_i32_1 = arith.constant 0 : i32
    %c0_i32_2 = arith.constant 0 : i32
    return %c0_i32, %c0_i32_0, %c0_i32_1 : i32, i32, i32
  }
  func.func @transform_5(%arg0: i32) -> (i32, i32) {
    %c0_i32 = arith.constant 0 : i32
    %c0_i32_0 = arith.constant 0 : i32
    %c0_i32_1 = arith.constant 0 : i32
    return %c0_i32, %c0_i32_0 : i32, i32
  }
  func.func @transform_6(%arg0: i32) -> (i32, i32) {
    %c0_i32 = arith.constant 0 : i32
    %c0_i32_0 = arith.constant 0 : i32
    %c0_i32_1 = arith.constant 0 : i32
    return %c0_i32, %c0_i32_0 : i32, i32
  }
  func.func @transform_7(%arg0: i32) -> (i32, i32) {
    %c0_i32 = arith.constant 0 : i32
    %c0_i32_0 = arith.constant 0 : i32
    return %c0_i32, %arg0 : i32, i32
  }
}

</mosaic_0001>

<llo_original>
// kernel: tpu_custom_call.1
$region0: #{tpu_custom_call.1}
  #allocation0 [shape = 'u32[]', space=smem, size = 0x4, offset = 0x4, fixed_abs, tag = 'smem constant byte address 0x4 - core index']
  #allocation1 [shape = 'u32[72,128]{1,0:T(1,128)}', space=vmem, size = 0x9000, scoped, tag = 'internal scratch']
  %s0 = inlined_call_operand.vmem [shape: bf16[8,512], index: 0, kind: input, shape index: {}]
  %s1 = inlined_call_operand.vmem [shape: bf16[128,8], index: 1, kind: input, shape index: {}]
  %s2 = inlined_call_operand.vmem [shape: f32[128,1], index: 2, kind: input, shape index: {}]
  %s3 = inlined_call_operand.vmem [shape: bf16[2,128,128], index: 3, kind: input, shape index: {}]
  %s4 = inlined_call_operand.vmem [shape: f32[2,128,1], index: 4, kind: input, shape index: {}]
  %s5 = inlined_call_operand.vmem [shape: bf16[8,128], index: 5, kind: input, shape index: {}]
  %s6 = inlined_call_operand.vmem [shape: f32[8,1], index: 6, kind: input, shape index: {}]
  %s7 = inlined_call_operand.hbm [shape: f32[8,512], index: 7, kind: output, shape index: {}]
  %s8 = sld [smem:[#allocation0]]
  $region61: #{tpu_custom_call.1} parent=0
    _
  %s10 = ssub.s32 1, %s8
  %s11 = scalar_select 0, %s10, %s8
  $region1: #{tpu_custom_call.1} parent=0
    #allocation2 [shape = 'u8[16384]{0}', space=vmem, size = 0x4000, scoped, tag = 'output window, operand 0']
    #allocation3 [shape = 's32[2]{0}', space=sflag, size = 0x8, scoped, tag = 'scoped memory for tpu_custom_call.1']
    %12 = vsyncpa [#allocation3], 0
    %s13 = scalar_lea.sflag [#allocation3], 1
    %14 = vsyncpa %s13, 0
    loop: start=0, step=1, limit=4
    $region2: #{tpu_custom_call.1} parent=1 // loop_pre_header
      _
    $region3: #{tpu_custom_call.1} parent=1 // loop_header
      %s16 = sphi 0, %s20
      %p17 = scmp.ge.s32.totalorder %s16, 4
      %s26 = sphi 0, %s28
      %s29 = sphi 0, %s26
      %s30 = sphi 0, %s29
      %s46 = sphi 0, %s30
      %s50 = sphi 0, %s50
      %s52 = sphi 0, %s50
      %s53 = sphi 0, %s52
      %s67 = sphi 0, %s53
      %s71 = sphi 0, %s71
      %s73 = sphi 0, %s71
      %s74 = sphi 0, %s73
      %s88 = sphi 0, %s74
      %s92 = sphi 0, %s92
      %s94 = sphi 0, %s92
      %s95 = sphi 0, %s94
      %s109 = sphi 0, %s95
      %s113 = sphi 0, %s113
      %s115 = sphi 0, %s113
      %s116 = sphi 0, %s115
      %s130 = sphi 0, %s116
      %s134 = sphi 0, %s134
      %s136 = sphi 0, %s134
      %s137 = sphi 0, %s136
      %s151 = sphi 0, %s137
      %s155 = sphi 0, %s155
      %s157 = sphi 0, %s155
      %s158 = sphi 0, %s157
      %s172 = sphi 0, %s158
      %s178 = sphi 0, %s180
      %s181 = sphi 0, %s178
      %s182 = sphi 0, %s181
      %s198 = sphi 0, %s182
    $region4: #{tpu_custom_call.1} parent=1 // loop_header_branch
      %19 = sbr.rel (%p17) target = $region8
    $region5: #{tpu_custom_call.1} parent=1 // loop_body
      %s21 = ssub.s32 %s16, 1
      %s22 = ssub.s32 %s16, 2
      %s23 = sadd.s32 %s16, 1
      %s24 = ssub.s32 %s16, %s23
      %p25 = scmp.eq.s32.totalorder %s24, 0
      %s27 = sadd.s32 %s26, 1
      %s28 = scalar_select %p25, %s26, %s27
      %p31 = pneg %p25
      %p32 = scmp.eq.s32.totalorder %s16, 1
      %p33 = por %p31, %p32
      %p34 = scmp.ne.s32.totalorder %s26, %s29
      %p35 = scmp.eq.s32.totalorder %s16, 0
      %p36 = por %p34, %p35
      %p37 = scmp.ne.s32.totalorder %s26, %s29
      %p38 = scmp.eq.s32.totalorder %s21, 1
      %p39 = por %p37, %p38
      %p40 = scmp.ne.s32.totalorder %s29, %s30
      %p41 = scmp.eq.s32.totalorder %s21, 0
      %p42 = por %p40, %p41
      %p43 = scmp.ne.s32.totalorder %s29, %s30
      %p44 = scmp.eq.s32.totalorder %s22, 1
      %p45 = por %p43, %p44
      %p47 = scmp.ne.s32.totalorder %s30, %s46
      %p48 = scmp.eq.s32.totalorder %s22, 0
      %p49 = por %p47, %p48
      %s51 = sadd.s32 %s50, 1
      %p54 = scmp.eq.s32.totalorder %s16, 1
      %p55 = scmp.ne.s32.totalorder %s50, %s52
      %p56 = scmp.eq.s32.totalorder %s16, 0
      %p57 = por %p55, %p56
      %p58 = scmp.ne.s32.totalorder %s50, %s52
      %p59 = scmp.eq.s32.totalorder %s21, 1
      %p60 = por %p58, %p59
      %p61 = scmp.ne.s32.totalorder %s52, %s53
      %p62 = scmp.eq.s32.totalorder %s21, 0
      %p63 = por %p61, %p62
      %p64 = scmp.ne.s32.totalorder %s52, %s53
      %p65 = scmp.eq.s32.totalorder %s22, 1
      %p66 = por %p64, %p65
      %p68 = scmp.ne.s32.totalorder %s53, %s67
      %p69 = scmp.eq.s32.totalorder %s22, 0
      %p70 = por %p68, %p69
      %s72 = sadd.s32 %s71, 1
      %p75 = scmp.eq.s32.totalorder %s16, 1
      %p76 = scmp.ne.s32.totalorder %s71, %s73
      %p77 = scmp.eq.s32.totalorder %s16, 0
      %p78 = por %p76, %p77
      %p79 = scmp.ne.s32.totalorder %s71, %s73
      %p80 = scmp.eq.s32.totalorder %s21, 1
      %p81 = por %p79, %p80
      %p82 = scmp.ne.s32.totalorder %s73, %s74
      %p83 = scmp.eq.s32.totalorder %s21, 0
      %p84 = por %p82, %p83
      %p85 = scmp.ne.s32.totalorder %s73, %s74
      %p86 = scmp.eq.s32.totalorder %s22, 1
      %p87 = por %p85, %p86
      %p89 = scmp.ne.s32.totalorder %s74, %s88
      %p90 = scmp.eq.s32.totalorder %s22, 0
      %p91 = por %p89, %p90
      %s93 = sadd.s32 %s92, 1
      %p96 = scmp.eq.s32.totalorder %s16, 1
      %p97 = scmp.ne.s32.totalorder %s92, %s94
      %p98 = scmp.eq.s32.totalorder %s16, 0
      %p99 = por %p97, %p98
      %p100 = scmp.ne.s32.totalorder %s92, %s94
      %p101 = scmp.eq.s32.totalorder %s21, 1
      %p102 = por %p100, %p101
      %p103 = scmp.ne.s32.totalorder %s94, %s95
      %p104 = scmp.eq.s32.totalorder %s21, 0
      %p105 = por %p103, %p104
      %p106 = scmp.ne.s32.totalorder %s94, %s95
      %p107 = scmp.eq.s32.totalorder %s22, 1
      %p108 = por %p106, %p107
      %p110 = scmp.ne.s32.totalorder %s95, %s109
      %p111 = scmp.eq.s32.totalorder %s22, 0
      %p112 = por %p110, %p111
      %s114 = sadd.s32 %s113, 1
      %p117 = scmp.eq.s32.totalorder %s16, 1
      %p118 = scmp.ne.s32.totalorder %s113, %s115
      %p119 = scmp.eq.s32.totalorder %s16, 0
      %p120 = por %p118, %p119
      %p121 = scmp.ne.s32.totalorder %s113, %s115
      %p122 = scmp.eq.s32.totalorder %s21, 1
      %p123 = por %p121, %p122
      %p124 = scmp.ne.s32.totalorder %s115, %s116
      %p125 = scmp.eq.s32.totalorder %s21, 0
      %p126 = por %p124, %p125
      %p127 = scmp.ne.s32.totalorder %s115, %s116
      %p128 = scmp.eq.s32.totalorder %s22, 1
      %p129 = por %p127, %p128
      %p131 = scmp.ne.s32.totalorder %s116, %s130
      %p132 = scmp.eq.s32.totalorder %s22, 0
      %p133 = por %p131, %p132
      %s135 = sadd.s32 %s134, 1
      %p138 = scmp.eq.s32.totalorder %s16, 1
      %p139 = scmp.ne.s32.totalorder %s134, %s136
      %p140 = scmp.eq.s32.totalorder %s16, 0
      %p141 = por %p139, %p140
      %p142 = scmp.ne.s32.totalorder %s134, %s136
      %p143 = scmp.eq.s32.totalorder %s21, 1
      %p144 = por %p142, %p143
      %p145 = scmp.ne.s32.totalorder %s136, %s137
      %p146 = scmp.eq.s32.totalorder %s21, 0
      %p147 = por %p145, %p146
      %p148 = scmp.ne.s32.totalorder %s136, %s137
      %p149 = scmp.eq.s32.totalorder %s22, 1
      %p150 = por %p148, %p149
      %p152 = scmp.ne.s32.totalorder %s137, %s151
      %p153 = scmp.eq.s32.totalorder %s22, 0
      %p154 = por %p152, %p153
      %s156 = sadd.s32 %s155, 1
      %p159 = scmp.eq.s32.totalorder %s16, 1
      %p160 = scmp.ne.s32.totalorder %s155, %s157
      %p161 = scmp.eq.s32.totalorder %s16, 0
      %p162 = por %p160, %p161
      %p163 = scmp.ne.s32.totalorder %s155, %s157
      %p164 = scmp.eq.s32.totalorder %s21, 1
      %p165 = por %p163, %p164
      %p166 = scmp.ne.s32.totalorder %s157, %s158
      %p167 = scmp.eq.s32.totalorder %s21, 0
      %p168 = por %p166, %p167
      %p169 = scmp.ne.s32.totalorder %s157, %s158
      %p170 = scmp.eq.s32.totalorder %s22, 1
      %p171 = por %p169, %p170
      %p173 = scmp.ne.s32.totalorder %s158, %s172
      %p174 = scmp.eq.s32.totalorder %s22, 0
      %p175 = por %p173, %p174
      %s176 = ssub.s32 %s16, %s23
      %p177 = scmp.eq.s32.totalorder %s176, 0
      %s179 = sadd.s32 %s178, 1
      %s180 = scalar_select %p177, %s178, %s179
      %p183 = pneg %p177
      %p184 = scmp.eq.s32.totalorder %s16, 1
      %p185 = por %p183, %p184
      %p186 = scmp.ne.s32.totalorder %s178, %s181
      %p187 = scmp.eq.s32.totalorder %s16, 0
      %p188 = por %p186, %p187
      %p189 = scmp.ne.s32.totalorder %s178, %s181
      %p190 = scmp.eq.s32.totalorder %s21, 1
      %p191 = por %p189, %p190
      %p192 = scmp.ne.s32.totalorder %s181, %s182
      %p193 = scmp.eq.s32.totalorder %s21, 0
      %p194 = por %p192, %p193
      %p195 = scmp.ne.s32.totalorder %s181, %s182
      %p196 = scmp.eq.s32.totalorder %s22, 1
      %p197 = por %p195, %p196
      %p199 = scmp.ne.s32.totalorder %s182, %s198
      %p200 = scmp.eq.s32.totalorder %s22, 0
      %p201 = por %p199, %p200
      %p202 = scmp.le.s32.totalorder 1, %s16
      %p203 = scmp.lt.s32.totalorder %s16, 3
      %p204 = pnand %p202, %p203
      %p205 = pneg %p204
      // Predicated region
      $region9: #{tpu_custom_call.1} parent=5 // pred_check
        _
      $region10: #{tpu_custom_call.1} parent=5 // pred_check_branch
        %207 = sbr.rel (%p204) target = $region12
      $region11: #{tpu_custom_call.1} parent=5 // pred_region
        %s208 = ssub.s32 %s16, 1
        // Predicated region
        $region13: #{tpu_custom_call.1} parent=11 // pred_check
          %p209 = pneg %p63
        $region14: #{tpu_custom_call.1} parent=11 // pred_check_branch
          %211 = sbr.rel (%p209) target = $region16
        $region15: #{tpu_custom_call.1} parent=11 // pred_region
          _
        $region16: #{tpu_custom_call.1} parent=11 // pred_fallthru
          _
        // Predicated region
        $region17: #{tpu_custom_call.1} parent=11 // pred_check
          %p212 = pneg %p84
        $region18: #{tpu_custom_call.1} parent=11 // pred_check_branch
          %214 = sbr.rel (%p212) target = $region20
        $region19: #{tpu_custom_call.1} parent=11 // pred_region
          _
        $region20: #{tpu_custom_call.1} parent=11 // pred_fallthru
          _
        // Predicated region
        $region21: #{tpu_custom_call.1} parent=11 // pred_check
          %p215 = pneg %p105
        $region22: #{tpu_custom_call.1} parent=11 // pred_check_branch
          %217 = sbr.rel (%p215) target = $region24
        $region23: #{tpu_custom_call.1} parent=11 // pred_region
          _
        $region24: #{tpu_custom_call.1} parent=11 // pred_fallthru
          _
        // Predicated region
        $region25: #{tpu_custom_call.1} parent=11 // pred_check
          %p218 = pneg %p126
        $region26: #{tpu_custom_call.1} parent=11 // pred_check_branch
          %220 = sbr.rel (%p218) target = $region28
        $region27: #{tpu_custom_call.1} parent=11 // pred_region
          _
        $region28: #{tpu_custom_call.1} parent=11 // pred_fallthru
          _
        // Predicated region
        $region29: #{tpu_custom_call.1} parent=11 // pred_check
          %p221 = pneg %p147
        $region30: #{tpu_custom_call.1} parent=11 // pred_check_branch
          %223 = sbr.rel (%p221) target = $region32
        $region31: #{tpu_custom_call.1} parent=11 // pred_region
          _
        $region32: #{tpu_custom_call.1} parent=11 // pred_fallthru
          _
        // Predicated region
        $region33: #{tpu_custom_call.1} parent=11 // pred_check
          %p224 = pneg %p168
        $region34: #{tpu_custom_call.1} parent=11 // pred_check_branch
          %226 = sbr.rel (%p224) target = $region36
        $region35: #{tpu_custom_call.1} parent=11 // pred_region
          _
        $region36: #{tpu_custom_call.1} parent=11 // pred_fallthru
          _
      $region12: #{tpu_custom_call.1} parent=5 // pred_fallthru
        _
      %p227 = scmp.lt.s32.totalorder %s16, 2
      // Predicated region
      $region37: #{tpu_custom_call.1} parent=5 // pred_check
        %p228 = pneg %p227
      $region38: #{tpu_custom_call.1} parent=5 // pred_check_branch
        %230 = sbr.rel (%p228) target = $region40
      $region39: #{tpu_custom_call.1} parent=5 // pred_region
        // Predicated region
        $region41: #{tpu_custom_call.1} parent=39 // pred_check
          %p231 = pneg %p36
        $region42: #{tpu_custom_call.1} parent=39 // pred_check_branch
          %233 = sbr.rel (%p231) target = $region44
        $region43: #{tpu_custom_call.1} parent=39 // pred_region
          %s234 = smul.u32 2, %s16
          %p235 = scmp.lt.s32.totalorder %s234, 3
          %s236 = scalar_select %p235, %s234, 3
          %s237 = smul.addr %s236, 4
          %s238 = scalar_lea.vmem %s0, %s237
          %s239 = smul.u32 2, %s16
        $region44: #{tpu_custom_call.1} parent=39 // pred_fallthru
          _
      $region40: #{tpu_custom_call.1} parent=5 // pred_fallthru
        _
      %p240 = scmp.le.s32.totalorder 1, %s16
      %p241 = scmp.lt.s32.totalorder %s16, 3
      %p242 = pnand %p240, %p241
      %p243 = pneg %p242
      // Predicated region
      $region45: #{tpu_custom_call.1} parent=5 // pred_check
        _
      $region46: #{tpu_custom_call.1} parent=5 // pred_check_branch
        %245 = sbr.rel (%p242) target = $region48
      $region47: #{tpu_custom_call.1} parent=5 // pred_region
        %s246 = ssub.s32 %s16, 1
        %s247 = smul.u32 2, %s21
        %p248 = scmp.lt.s32.totalorder %s247, 3
        %s249 = scalar_select %p248, %s247, 3
        %s250 = smul.addr %s249, 4
        %s251 = scalar_lea.vmem %s0, %s250
        %p252 = pneg %p42
        %p253 = pneg %p39
        %p254 = pneg %p63
        %p255 = pneg %p60
        %p256 = pneg %p84
        %p257 = pneg %p81
        %p258 = pneg %p105
        %p259 = pneg %p102
        %p260 = pneg %p126
        %p261 = pneg %p123
        %p262 = pneg %p147
        %p263 = pneg %p144
        %p264 = pneg %p168
        %p265 = pneg %p165
        %p266 = pneg %p194
        %p267 = pneg %p191
        %s268 = sand.u32 %s181, 1
        %s269 = scalar_lea.sflag [#allocation3], %s268
        %s270 = sand.u32 %s181, 1
        %s271 = smul.addr %s270, 16
        %s272 = scalar_lea.vmem [#allocation2], %s271
        %s273 = smul.u32 2, %s21
        %p274 = scmp.lt.s32.totalorder %s273, 3
        %s275 = scalar_select %p274, %s273, 3
        %s276 = smul.addr %s275, 4
        %s277 = scalar_lea.vmem %s0, %s276
        %s278 = smul.u32 2, %s21
        %s279 = smul.u32 2, %s21
        %v281 = vld [vmem:[%s1] sm:$0xf]
        %v282 = vld [vmem:[%s1 + $0x4] sm:$0xf]
        %v283 = vld [vmem:[%s1 + $0x8] sm:$0xf]
        %v284 = vld [vmem:[%s1 + $0xc] sm:$0xf]
        %v285 = vld [vmem:[%s1 + $0x10] sm:$0xf]
        %v286 = vld [vmem:[%s1 + $0x14] sm:$0xf]
        %v287 = vld [vmem:[%s1 + $0x18] sm:$0xf]
        %v288 = vld [vmem:[%s1 + $0x1c] sm:$0xf]
        %v289 = vld [vmem:[%s1 + $0x20] sm:$0xf]
        %v290 = vld [vmem:[%s1 + $0x24] sm:$0xf]
        %v291 = vld [vmem:[%s1 + $0x28] sm:$0xf]
        %v292 = vld [vmem:[%s1 + $0x2c] sm:$0xf]
        %v293 = vld [vmem:[%s1 + $0x30] sm:$0xf]
        %v294 = vld [vmem:[%s1 + $0x34] sm:$0xf]
        %v295 = vld [vmem:[%s1 + $0x38] sm:$0xf]
        %v296 = vld [vmem:[%s1 + $0x3c] sm:$0xf]
        %v297 = vld [vmem:[%s277] sm:$0xff]
        %v298 = vld [vmem:[%s2] sm:$0xff]
        %v299 = vld [vmem:[%s2 + $0x8] sm:$0xff]
        %v300 = vld [vmem:[%s2 + $0x10] sm:$0xff]
        %v301 = vld [vmem:[%s2 + $0x18] sm:$0xff]
        %v302 = vld [vmem:[%s2 + $0x20] sm:$0xff]
        %v303 = vld [vmem:[%s2 + $0x28] sm:$0xff]
        %v304 = vld [vmem:[%s2 + $0x30] sm:$0xff]
        %v305 = vld [vmem:[%s2 + $0x38] sm:$0xff]
        %v306 = vld [vmem:[%s2 + $0x40] sm:$0xff]
        %v307 = vld [vmem:[%s2 + $0x48] sm:$0xff]
        %v308 = vld [vmem:[%s2 + $0x50] sm:$0xff]
        %v309 = vld [vmem:[%s2 + $0x58] sm:$0xff]
        %v310 = vld [vmem:[%s2 + $0x60] sm:$0xff]
        %v311 = vld [vmem:[%s2 + $0x68] sm:$0xff]
        %v312 = vld [vmem:[%s2 + $0x70] sm:$0xff]
        %v313 = vld [vmem:[%s2 + $0x78] sm:$0xff]
        %315 = vset.pattern.permute.xlu0 0
        %316 = vperm.xlu0 %315, %v298
        %v317 = vpop.permute.xlu0 %316
        %320 = vset.pattern.permute.xlu0 0
        %321 = vperm.xlu0 %320, %v299
        %v322 = vpop.permute.xlu0 %321
        %325 = vset.pattern.permute.xlu0 0
        %326 = vperm.xlu0 %325, %v300
        %v327 = vpop.permute.xlu0 %326
        %330 = vset.pattern.permute.xlu0 0
        %331 = vperm.xlu0 %330, %v301
        %v332 = vpop.permute.xlu0 %331
        %335 = vset.pattern.permute.xlu0 0
        %336 = vperm.xlu0 %335, %v302
        %v337 = vpop.permute.xlu0 %336
        %340 = vset.pattern.permute.xlu0 0
        %341 = vperm.xlu0 %340, %v303
        %v342 = vpop.permute.xlu0 %341
        %345 = vset.pattern.permute.xlu0 0
        %346 = vperm.xlu0 %345, %v304
        %v347 = vpop.permute.xlu0 %346
        %350 = vset.pattern.permute.xlu0 0
        %351 = vperm.xlu0 %350, %v305
        %v352 = vpop.permute.xlu0 %351
        %355 = vset.pattern.permute.xlu0 0
        %356 = vperm.xlu0 %355, %v306
        %v357 = vpop.permute.xlu0 %356
        %360 = vset.pattern.permute.xlu0 0
        %361 = vperm.xlu0 %360, %v307
        %v362 = vpop.permute.xlu0 %361
        %365 = vset.pattern.permute.xlu0 0
        %366 = vperm.xlu0 %365, %v308
        %v367 = vpop.permute.xlu0 %366
        %370 = vset.pattern.permute.xlu0 0
        %371 = vperm.xlu0 %370, %v309
        %v372 = vpop.permute.xlu0 %371
        %375 = vset.pattern.permute.xlu0 0
        %376 = vperm.xlu0 %375, %v310
        %v377 = vpop.permute.xlu0 %376
        %380 = vset.pattern.permute.xlu0 0
        %381 = vperm.xlu0 %380, %v311
        %v382 = vpop.permute.xlu0 %381
        %385 = vset.pattern.permute.xlu0 0
        %386 = vperm.xlu0 %385, %v312
        %v387 = vpop.permute.xlu0 %386
        %390 = vset.pattern.permute.xlu0 0
        %391 = vperm.xlu0 %390, %v313
        %v392 = vpop.permute.xlu0 %391
        %v410 = vunpack.c.l.b16 %v281
        %v411 = vunpack.c.l.b16 %v282
        %v412 = vunpack.c.l.b16 %v283
        %v413 = vunpack.c.l.b16 %v284
        %v414 = vunpack.c.l.b16 %v285
        %v415 = vunpack.c.l.b16 %v286
        %v416 = vunpack.c.l.b16 %v287
        %v417 = vunpack.c.l.b16 %v288
        %v418 = vunpack.c.l.b16 %v289
        %v419 = vunpack.c.l.b16 %v290
        %v420 = vunpack.c.l.b16 %v291
        %v421 = vunpack.c.l.b16 %v292
        %v422 = vunpack.c.l.b16 %v293
        %v423 = vunpack.c.l.b16 %v294
        %v424 = vunpack.c.l.b16 %v295
        %v425 = vunpack.c.l.b16 %v296
        %v426 = vpack.c.b16 %v411, %v410
        %v427 = vpack.c.b16 %v413, %v412
        %v428 = vpack.c.b16 %v415, %v414
        %v429 = vpack.c.b16 %v417, %v416
        %v430 = vpack.c.b16 %v419, %v418
        %v431 = vpack.c.b16 %v421, %v420
        %v432 = vpack.c.b16 %v423, %v422
        %v433 = vpack.c.b16 %v425, %v424
        %v435 = vunpack.c.l.b16 %v297
        %v436 = vunpack.c.h.b16 %v297
        %v437 = vpack.c.b16 %v435, %v435
        %v438 = vpack.c.b16 %v436, %v436
        %vm439 = vcmask 64512
        %v441 = vsel %vm439, %v426, 0
        %v444 = vsel %vm439, %v427, 0
        %v447 = vsel %vm439, %v428, 0
        %v450 = vsel %vm439, %v429, 0
        %v453 = vsel %vm439, %v430, 0
        %v456 = vsel %vm439, %v431, 0
        %v459 = vsel %vm439, %v432, 0
        %v462 = vsel %vm439, %v433, 0
        %vm464 = vcmask 1043456
        %v466 = vsel %vm464, %v437, 0
        %v469 = vsel %vm464, %v438, 0
        %471 = vmatpush.bf16.msra.mxu0 0
        %472 = vmatpush.bf16.msra.mxu0 0
        %473 = vmatpush.bf16.msra.mxu0 0
        %474 = vmatpush.bf16.msra.mxu0 0
        %475 = vmatpush.bf16.msra.mxu0 0
        %476 = vmatpush.bf16.msra.mxu0 0
        %477 = vmatpush.bf16.msra.mxu0 0
        %478 = vmatpush.bf16.msra.mxu0 %v466
        %479 = vmatmul.bf16.gmra.mxu0 %v441
        %v480 = vpop.f32.mrf.mxu0
        %v481 = vadd.f32 %v317, %v480
        %v482 = vpop.f32.mrf.mxu0
        %v483 = vadd.f32 %v322, %v482
        %484 = vmatmul.bf16.gmra.mxu0 %v444
        %v485 = vpop.f32.mrf.mxu0
        %v486 = vadd.f32 %v327, %v485
        %v487 = vpop.f32.mrf.mxu0
        %v488 = vadd.f32 %v332, %v487
        %489 = vmatmul.bf16.gmra.mxu0 %v447
        %v490 = vpop.f32.mrf.mxu0
        %v491 = vadd.f32 %v337, %v490
        %v492 = vpop.f32.mrf.mxu0
        %v493 = vadd.f32 %v342, %v492
        %494 = vmatmul.bf16.gmra.mxu0 %v450
        %v495 = vpop.f32.mrf.mxu0
        %v496 = vadd.f32 %v347, %v495
        %v497 = vpop.f32.mrf.mxu0
        %v498 = vadd.f32 %v352, %v497
        %499 = vmatmul.bf16.gmra.mxu0 %v453
        %v500 = vpop.f32.mrf.mxu0
        %v501 = vadd.f32 %v357, %v500
        %v502 = vpop.f32.mrf.mxu0
        %v503 = vadd.f32 %v362, %v502
        %504 = vmatmul.bf16.gmra.mxu0 %v456
        %v505 = vpop.f32.mrf.mxu0
        %v506 = vadd.f32 %v367, %v505
        %v507 = vpop.f32.mrf.mxu0
        %v508 = vadd.f32 %v372, %v507
        %509 = vmatmul.bf16.gmra.mxu0 %v459
        %v510 = vpop.f32.mrf.mxu0
        %v511 = vadd.f32 %v377, %v510
        %v512 = vpop.f32.mrf.mxu0
        %v513 = vadd.f32 %v382, %v512
        %514 = vmatmul.bf16.gmra.mxu0 %v462
        %v515 = vpop.f32.mrf.mxu0
        %v516 = vadd.f32 %v387, %v515
        %v517 = vpop.f32.mrf.mxu0
        %v518 = vadd.f32 %v392, %v517
        %519 = vdwg.mxu0
        %520 = vmatpush.bf16.msra.mxu0 0
        %521 = vmatpush.bf16.msra.mxu0 0
        %522 = vmatpush.bf16.msra.mxu0 0
        %523 = vmatpush.bf16.msra.mxu0 0
        %524 = vmatpush.bf16.msra.mxu0 0
        %525 = vmatpush.bf16.msra.mxu0 0
        %526 = vmatpush.bf16.msra.mxu0 0
        %527 = vmatpush.bf16.msra.mxu0 %v469
        %528 = vmatmul.bf16.gmra.mxu0 %v441
        %v529 = vpop.f32.mrf.mxu0
        %v530 = vadd.f32 %v317, %v529
        %v531 = vpop.f32.mrf.mxu0
        %v532 = vadd.f32 %v322, %v531
        %533 = vmatmul.bf16.gmra.mxu0 %v444
        %v534 = vpop.f32.mrf.mxu0
        %v535 = vadd.f32 %v327, %v534
        %v536 = vpop.f32.mrf.mxu0
        %v537 = vadd.f32 %v332, %v536
        %538 = vmatmul.bf16.gmra.mxu0 %v447
        %v539 = vpop.f32.mrf.mxu0
        %v540 = vadd.f32 %v337, %v539
        %v541 = vpop.f32.mrf.mxu0
        %v542 = vadd.f32 %v342, %v541
        %543 = vmatmul.bf16.gmra.mxu0 %v450
        %v544 = vpop.f32.mrf.mxu0
        %v545 = vadd.f32 %v347, %v544
        %v546 = vpop.f32.mrf.mxu0
        %v547 = vadd.f32 %v352, %v546
        %548 = vmatmul.bf16.gmra.mxu0 %v453
        %v549 = vpop.f32.mrf.mxu0
        %v550 = vadd.f32 %v357, %v549
        %v551 = vpop.f32.mrf.mxu0
        %v552 = vadd.f32 %v362, %v551
        %553 = vmatmul.bf16.gmra.mxu0 %v456
        %v554 = vpop.f32.mrf.mxu0
        %v555 = vadd.f32 %v367, %v554
        %v556 = vpop.f32.mrf.mxu0
        %v557 = vadd.f32 %v372, %v556
        %558 = vmatmul.bf16.gmra.mxu0 %v459
        %v559 = vpop.f32.mrf.mxu0
        %v560 = vadd.f32 %v377, %v559
        %v561 = vpop.f32.mrf.mxu0
        %v562 = vadd.f32 %v382, %v561
        %563 = vmatmul.bf16.gmra.mxu0 %v462
        %v564 = vpop.f32.mrf.mxu0
        %v565 = vadd.f32 %v387, %v564
        %v566 = vpop.f32.mrf.mxu0
        %v567 = vadd.f32 %v392, %v566
        %568 = vdwg.mxu0
        %v569 = vld [vmem:[%s3] sm:$0xf]
        %v570 = vld [vmem:[%s3 + $0x4] sm:$0xf]
        %v571 = vld [vmem:[%s3 + $0x8] sm:$0xf]
        %v572 = vld [vmem:[%s3 + $0xc] sm:$0xf]
        %v573 = vld [vmem:[%s3 + $0x10] sm:$0xf]
        %v574 = vld [vmem:[%s3 + $0x14] sm:$0xf]
        %v575 = vld [vmem:[%s3 + $0x18] sm:$0xf]
        %v576 = vld [vmem:[%s3 + $0x1c] sm:$0xf]
        %v577 = vld [vmem:[%s3 + $0x20] sm:$0xf]
        %v578 = vld [vmem:[%s3 + $0x24] sm:$0xf]
        %v579 = vld [vmem:[%s3 + $0x28] sm:$0xf]
        %v580 = vld [vmem:[%s3 + $0x2c] sm:$0xf]
        %v581 = vld [vmem:[%s3 + $0x30] sm:$0xf]
        %v582 = vld [vmem:[%s3 + $0x34] sm:$0xf]
        %v583 = vld [vmem:[%s3 + $0x38] sm:$0xf]
        %v584 = vld [vmem:[%s3 + $0x3c] sm:$0xf]
        %v585 = vld [vmem:[%s4] sm:$0xff]
        %v586 = vld [vmem:[%s4 + $0x8] sm:$0xff]
        %v587 = vld [vmem:[%s4 + $0x10] sm:$0xff]
        %v588 = vld [vmem:[%s4 + $0x18] sm:$0xff]
        %v589 = vld [vmem:[%s4 + $0x20] sm:$0xff]
        %v590 = vld [vmem:[%s4 + $0x28] sm:$0xff]
        %v591 = vld [vmem:[%s4 + $0x30] sm:$0xff]
        %v592 = vld [vmem:[%s4 + $0x38] sm:$0xff]
        %v593 = vld [vmem:[%s4 + $0x40] sm:$0xff]
        %v594 = vld [vmem:[%s4 + $0x48] sm:$0xff]
        %v595 = vld [vmem:[%s4 + $0x50] sm:$0xff]
        %v596 = vld [vmem:[%s4 + $0x58] sm:$0xff]
        %v597 = vld [vmem:[%s4 + $0x60] sm:$0xff]
        %v598 = vld [vmem:[%s4 + $0x68] sm:$0xff]
        %v599 = vld [vmem:[%s4 + $0x70] sm:$0xff]
        %v600 = vld [vmem:[%s4 + $0x78] sm:$0xff]
        %v601 = vpack.c.bf16 %v483, %v481
        %v602 = vpack.c.bf16 %v532, %v530
        %v603 = vpack.c.bf16 %v488, %v486
        %v604 = vpack.c.bf16 %v537, %v535
        %v605 = vpack.c.bf16 %v493, %v491
        %v606 = vpack.c.bf16 %v542, %v540
        %v607 = vpack.c.bf16 %v498, %v496
        %v608 = vpack.c.bf16 %v547, %v545
        %v609 = vpack.c.bf16 %v503, %v501
        %v610 = vpack.c.bf16 %v552, %v550
        %v611 = vpack.c.bf16 %v508, %v506
        %v612 = vpack.c.bf16 %v557, %v555
        %v613 = vpack.c.bf16 %v513, %v511
        %v614 = vpack.c.bf16 %v562, %v560
        %v615 = vpack.c.bf16 %v518, %v516
        %v616 = vpack.c.bf16 %v567, %v565
        %618 = vset.pattern.permute.xlu0 0
        %619 = vperm.xlu0 %618, %v585
        %v620 = vpop.permute.xlu0 %619
        %623 = vset.pattern.permute.xlu0 0
        %624 = vperm.xlu0 %623, %v586
        %v625 = vpop.permute.xlu0 %624
        %628 = vset.pattern.permute.xlu0 0
        %629 = vperm.xlu0 %628, %v587
        %v630 = vpop.permute.xlu0 %629
        %633 = vset.pattern.permute.xlu0 0
        %634 = vperm.xlu0 %633, %v588
        %v635 = vpop.permute.xlu0 %634
        %638 = vset.pattern.permute.xlu0 0
        %639 = vperm.xlu0 %638, %v589
        %v640 = vpop.permute.xlu0 %639
        %643 = vset.pattern.permute.xlu0 0
        %644 = vperm.xlu0 %643, %v590
        %v645 = vpop.permute.xlu0 %644
        %648 = vset.pattern.permute.xlu0 0
        %649 = vperm.xlu0 %648, %v591
        %v650 = vpop.permute.xlu0 %649
        %653 = vset.pattern.permute.xlu0 0
        %654 = vperm.xlu0 %653, %v592
        %v655 = vpop.permute.xlu0 %654
        %658 = vset.pattern.permute.xlu0 0
        %659 = vperm.xlu0 %658, %v593
        %v660 = vpop.permute.xlu0 %659
        %663 = vset.pattern.permute.xlu0 0
        %664 = vperm.xlu0 %663, %v594
        %v665 = vpop.permute.xlu0 %664
        %668 = vset.pattern.permute.xlu0 0
        %669 = vperm.xlu0 %668, %v595
        %v670 = vpop.permute.xlu0 %669
        %673 = vset.pattern.permute.xlu0 0
        %674 = vperm.xlu0 %673, %v596
        %v675 = vpop.permute.xlu0 %674
        %678 = vset.pattern.permute.xlu0 0
        %679 = vperm.xlu0 %678, %v597
        %v680 = vpop.permute.xlu0 %679
        %683 = vset.pattern.permute.xlu0 0
        %684 = vperm.xlu0 %683, %v598
        %v685 = vpop.permute.xlu0 %684
        %688 = vset.pattern.permute.xlu0 0
        %689 = vperm.xlu0 %688, %v599
        %v690 = vpop.permute.xlu0 %689
        %693 = vset.pattern.permute.xlu0 0
        %694 = vperm.xlu0 %693, %v600
        %v695 = vpop.permute.xlu0 %694
        %v713 = vunpack.c.l.b16 %v569
        %v714 = vunpack.c.l.b16 %v570
        %v715 = vunpack.c.l.b16 %v571
        %v716 = vunpack.c.l.b16 %v572
        %v717 = vunpack.c.l.b16 %v573
        %v718 = vunpack.c.l.b16 %v574
        %v719 = vunpack.c.l.b16 %v575
        %v720 = vunpack.c.l.b16 %v576
        %v721 = vunpack.c.l.b16 %v577
        %v722 = vunpack.c.l.b16 %v578
        %v723 = vunpack.c.l.b16 %v579
        %v724 = vunpack.c.l.b16 %v580
        %v725 = vunpack.c.l.b16 %v581
        %v726 = vunpack.c.l.b16 %v582
        %v727 = vunpack.c.l.b16 %v583
        %v728 = vunpack.c.l.b16 %v584
        %v729 = vpack.c.b16 %v714, %v713
        %v730 = vpack.c.b16 %v716, %v715
        %v731 = vpack.c.b16 %v718, %v717
        %v732 = vpack.c.b16 %v720, %v719
        %v733 = vpack.c.b16 %v722, %v721
        %v734 = vpack.c.b16 %v724, %v723
        %v735 = vpack.c.b16 %v726, %v725
        %v736 = vpack.c.b16 %v728, %v727
        %745 = vmatpush.bf16.msra.mxu0 %v615
        %746 = vmatpush.bf16.msra.mxu0 %v613
        %747 = vmatpush.bf16.msra.mxu0 %v611
        %748 = vmatpush.bf16.msra.mxu0 %v609
        %749 = vmatpush.bf16.msra.mxu0 %v607
        %750 = vmatpush.bf16.msra.mxu0 %v605
        %751 = vmatpush.bf16.msra.mxu0 %v603
        %752 = vmatpush.bf16.msra.mxu0 %v601
        %753 = vmatmul.bf16.gmra.mxu0 %v729
        %v754 = vpop.f32.mrf.mxu0
        %v755 = vadd.f32 %v620, %v754
        %v756 = vpop.f32.mrf.mxu0
        %v757 = vadd.f32 %v625, %v756
        %758 = vmatmul.bf16.gmra.mxu0 %v730
        %v759 = vpop.f32.mrf.mxu0
        %v760 = vadd.f32 %v630, %v759
        %v761 = vpop.f32.mrf.mxu0
        %v762 = vadd.f32 %v635, %v761
        %763 = vmatmul.bf16.gmra.mxu0 %v731
        %v764 = vpop.f32.mrf.mxu0
        %v765 = vadd.f32 %v640, %v764
        %v766 = vpop.f32.mrf.mxu0
        %v767 = vadd.f32 %v645, %v766
        %768 = vmatmul.bf16.gmra.mxu0 %v732
        %v769 = vpop.f32.mrf.mxu0
        %v770 = vadd.f32 %v650, %v769
        %v771 = vpop.f32.mrf.mxu0
        %v772 = vadd.f32 %v655, %v771
        %773 = vmatmul.bf16.gmra.mxu0 %v733
        %v774 = vpop.f32.mrf.mxu0
        %v775 = vadd.f32 %v660, %v774
        %v776 = vpop.f32.mrf.mxu0
        %v777 = vadd.f32 %v665, %v776
        %778 = vmatmul.bf16.gmra.mxu0 %v734
        %v779 = vpop.f32.mrf.mxu0
        %v780 = vadd.f32 %v670, %v779
        %v781 = vpop.f32.mrf.mxu0
        %v782 = vadd.f32 %v675, %v781
        %783 = vmatmul.bf16.gmra.mxu0 %v735
        %v784 = vpop.f32.mrf.mxu0
        %v785 = vadd.f32 %v680, %v784
        %v786 = vpop.f32.mrf.mxu0
        %v787 = vadd.f32 %v685, %v786
        %788 = vmatmul.bf16.gmra.mxu0 %v736
        %v789 = vpop.f32.mrf.mxu0
        %v790 = vadd.f32 %v690, %v789
        %v791 = vpop.f32.mrf.mxu0
        %v792 = vadd.f32 %v695, %v791
        %793 = vdwg.mxu0
        %794 = vmatpush.bf16.msra.mxu0 %v616
        %795 = vmatpush.bf16.msra.mxu0 %v614
        %796 = vmatpush.bf16.msra.mxu0 %v612
        %797 = vmatpush.bf16.msra.mxu0 %v610
        %798 = vmatpush.bf16.msra.mxu0 %v608
        %799 = vmatpush.bf16.msra.mxu0 %v606
        %800 = vmatpush.bf16.msra.mxu0 %v604
        %801 = vmatpush.bf16.msra.mxu0 %v602
        %802 = vmatmul.bf16.gmra.mxu0 %v729
        %v803 = vpop.f32.mrf.mxu0
        %v804 = vadd.f32 %v620, %v803
        %v805 = vpop.f32.mrf.mxu0
        %v806 = vadd.f32 %v625, %v805
        %807 = vmatmul.bf16.gmra.mxu0 %v730
        %v808 = vpop.f32.mrf.mxu0
        %v809 = vadd.f32 %v630, %v808
        %v810 = vpop.f32.mrf.mxu0
        %v811 = vadd.f32 %v635, %v810
        %812 = vmatmul.bf16.gmra.mxu0 %v731
        %v813 = vpop.f32.mrf.mxu0
        %v814 = vadd.f32 %v640, %v813
        %v815 = vpop.f32.mrf.mxu0
        %v816 = vadd.f32 %v645, %v815
        %817 = vmatmul.bf16.gmra.mxu0 %v732
        %v818 = vpop.f32.mrf.mxu0
        %v819 = vadd.f32 %v650, %v818
        %v820 = vpop.f32.mrf.mxu0
        %v821 = vadd.f32 %v655, %v820
        %822 = vmatmul.bf16.gmra.mxu0 %v733
        %v823 = vpop.f32.mrf.mxu0
        %v824 = vadd.f32 %v660, %v823
        %v825 = vpop.f32.mrf.mxu0
        %v826 = vadd.f32 %v665, %v825
        %827 = vmatmul.bf16.gmra.mxu0 %v734
        %v828 = vpop.f32.mrf.mxu0
        %v829 = vadd.f32 %v670, %v828
        %v830 = vpop.f32.mrf.mxu0
        %v831 = vadd.f32 %v675, %v830
        %832 = vmatmul.bf16.gmra.mxu0 %v735
        %v833 = vpop.f32.mrf.mxu0
        %v834 = vadd.f32 %v680, %v833
        %v835 = vpop.f32.mrf.mxu0
        %v836 = vadd.f32 %v685, %v835
        %837 = vmatmul.bf16.gmra.mxu0 %v736
        %v838 = vpop.f32.mrf.mxu0
        %v839 = vadd.f32 %v690, %v838
        %v840 = vpop.f32.mrf.mxu0
        %v841 = vadd.f32 %v695, %v840
        %842 = vdwg.mxu0
        %v843 = vmax.f32 %v755, 0.0
        %v844 = vmax.f32 %v804, 0.0
        %v845 = vmax.f32 %v757, 0.0
        %v846 = vmax.f32 %v806, 0.0
        %v847 = vmax.f32 %v760, 0.0
        %v848 = vmax.f32 %v809, 0.0
        %v849 = vmax.f32 %v762, 0.0
        %v850 = vmax.f32 %v811, 0.0
        %v851 = vmax.f32 %v765, 0.0
        %v852 = vmax.f32 %v814, 0.0
        %v853 = vmax.f32 %v767, 0.0
        %v854 = vmax.f32 %v816, 0.0
        %v855 = vmax.f32 %v770, 0.0
        %v856 = vmax.f32 %v819, 0.0
        %v857 = vmax.f32 %v772, 0.0
        %v858 = vmax.f32 %v821, 0.0
        %v859 = vmax.f32 %v775, 0.0
        %v860 = vmax.f32 %v824, 0.0
        %v861 = vmax.f32 %v777, 0.0
        %v862 = vmax.f32 %v826, 0.0
        %v863 = vmax.f32 %v780, 0.0
        %v864 = vmax.f32 %v829, 0.0
        %v865 = vmax.f32 %v782, 0.0
        %v866 = vmax.f32 %v831, 0.0
        %v867 = vmax.f32 %v785, 0.0
        %v868 = vmax.f32 %v834, 0.0
        %v869 = vmax.f32 %v787, 0.0
        %v870 = vmax.f32 %v836, 0.0
        %v871 = vmax.f32 %v790, 0.0
        %v872 = vmax.f32 %v839, 0.0
        %v873 = vmax.f32 %v792, 0.0
        %v874 = vmax.f32 %v841, 0.0
        %s875 = scalar_lea.vmem %s3, 64
        %v876 = vld [vmem:[%s875] sm:$0xf]
        %v877 = vld [vmem:[%s875 + $0x4] sm:$0xf]
        %v878 = vld [vmem:[%s875 + $0x8] sm:$0xf]
        %v879 = vld [vmem:[%s875 + $0xc] sm:$0xf]
        %v880 = vld [vmem:[%s875 + $0x10] sm:$0xf]
        %v881 = vld [vmem:[%s875 + $0x14] sm:$0xf]
        %v882 = vld [vmem:[%s875 + $0x18] sm:$0xf]
        %v883 = vld [vmem:[%s875 + $0x1c] sm:$0xf]
        %v884 = vld [vmem:[%s875 + $0x20] sm:$0xf]
        %v885 = vld [vmem:[%s875 + $0x24] sm:$0xf]
        %v886 = vld [vmem:[%s875 + $0x28] sm:$0xf]
        %v887 = vld [vmem:[%s875 + $0x2c] sm:$0xf]
        %v888 = vld [vmem:[%s875 + $0x30] sm:$0xf]
        %v889 = vld [vmem:[%s875 + $0x34] sm:$0xf]
        %v890 = vld [vmem:[%s875 + $0x38] sm:$0xf]
        %v891 = vld [vmem:[%s875 + $0x3c] sm:$0xf]
        %s892 = scalar_lea.vmem %s4, 128
        %v893 = vld [vmem:[%s892] sm:$0xff]
        %v894 = vld [vmem:[%s892 + $0x8] sm:$0xff]
        %v895 = vld [vmem:[%s892 + $0x10] sm:$0xff]
        %v896 = vld [vmem:[%s892 + $0x18] sm:$0xff]
        %v897 = vld [vmem:[%s892 + $0x20] sm:$0xff]
        %v898 = vld [vmem:[%s892 + $0x28] sm:$0xff]
        %v899 = vld [vmem:[%s892 + $0x30] sm:$0xff]
        %v900 = vld [vmem:[%s892 + $0x38] sm:$0xff]
        %v901 = vld [vmem:[%s892 + $0x40] sm:$0xff]
        %v902 = vld [vmem:[%s892 + $0x48] sm:$0xff]
        %v903 = vld [vmem:[%s892 + $0x50] sm:$0xff]
        %v904 = vld [vmem:[%s892 + $0x58] sm:$0xff]
        %v905 = vld [vmem:[%s892 + $0x60] sm:$0xff]
        %v906 = vld [vmem:[%s892 + $0x68] sm:$0xff]
        %v907 = vld [vmem:[%s892 + $0x70] sm:$0xff]
        %v908 = vld [vmem:[%s892 + $0x78] sm:$0xff]
        %v909 = vpack.c.bf16 %v845, %v843
        %v910 = vpack.c.bf16 %v846, %v844
        %v911 = vpack.c.bf16 %v849, %v847
        %v912 = vpack.c.bf16 %v850, %v848
        %v913 = vpack.c.bf16 %v853, %v851
        %v914 = vpack.c.bf16 %v854, %v852
        %v915 = vpack.c.bf16 %v857, %v855
        %v916 = vpack.c.bf16 %v858, %v856
        %v917 = vpack.c.bf16 %v861, %v859
        %v918 = vpack.c.bf16 %v862, %v860
        %v919 = vpack.c.bf16 %v865, %v863
        %v920 = vpack.c.bf16 %v866, %v864
        %v921 = vpack.c.bf16 %v869, %v867
        %v922 = vpack.c.bf16 %v870, %v868
        %v923 = vpack.c.bf16 %v873, %v871
        %v924 = vpack.c.bf16 %v874, %v872
        %926 = vset.pattern.permute.xlu0 0
        %927 = vperm.xlu0 %926, %v893
        %v928 = vpop.permute.xlu0 %927
        %931 = vset.pattern.permute.xlu0 0
        %932 = vperm.xlu0 %931, %v894
        %v933 = vpop.permute.xlu0 %932
        %936 = vset.pattern.permute.xlu0 0
        %937 = vperm.xlu0 %936, %v895
        %v938 = vpop.permute.xlu0 %937
        %941 = vset.pattern.permute.xlu0 0
        %942 = vperm.xlu0 %941, %v896
        %v943 = vpop.permute.xlu0 %942
        %946 = vset.pattern.permute.xlu0 0
        %947 = vperm.xlu0 %946, %v897
        %v948 = vpop.permute.xlu0 %947
        %951 = vset.pattern.permute.xlu0 0
        %952 = vperm.xlu0 %951, %v898
        %v953 = vpop.permute.xlu0 %952
        %956 = vset.pattern.permute.xlu0 0
        %957 = vperm.xlu0 %956, %v899
        %v958 = vpop.permute.xlu0 %957
        %961 = vset.pattern.permute.xlu0 0
        %962 = vperm.xlu0 %961, %v900
        %v963 = vpop.permute.xlu0 %962
        %966 = vset.pattern.permute.xlu0 0
        %967 = vperm.xlu0 %966, %v901
        %v968 = vpop.permute.xlu0 %967
        %971 = vset.pattern.permute.xlu0 0
        %972 = vperm.xlu0 %971, %v902
        %v973 = vpop.permute.xlu0 %972
        %976 = vset.pattern.permute.xlu0 0
        %977 = vperm.xlu0 %976, %v903
        %v978 = vpop.permute.xlu0 %977
        %981 = vset.pattern.permute.xlu0 0
        %982 = vperm.xlu0 %981, %v904
        %v983 = vpop.permute.xlu0 %982
        %986 = vset.pattern.permute.xlu0 0
        %987 = vperm.xlu0 %986, %v905
        %v988 = vpop.permute.xlu0 %987
        %991 = vset.pattern.permute.xlu0 0
        %992 = vperm.xlu0 %991, %v906
        %v993 = vpop.permute.xlu0 %992
        %996 = vset.pattern.permute.xlu0 0
        %997 = vperm.xlu0 %996, %v907
        %v998 = vpop.permute.xlu0 %997
        %1001 = vset.pattern.permute.xlu0 0
        %1002 = vperm.xlu0 %1001, %v908
        %v1003 = vpop.permute.xlu0 %1002
        %v1021 = vunpack.c.l.b16 %v876
        %v1022 = vunpack.c.l.b16 %v877
        %v1023 = vunpack.c.l.b16 %v878
        %v1024 = vunpack.c.l.b16 %v879
        %v1025 = vunpack.c.l.b16 %v880
        %v1026 = vunpack.c.l.b16 %v881
        %v1027 = vunpack.c.l.b16 %v882
        %v1028 = vunpack.c.l.b16 %v883
        %v1029 = vunpack.c.l.b16 %v884
        %v1030 = vunpack.c.l.b16 %v885
        %v1031 = vunpack.c.l.b16 %v886
        %v1032 = vunpack.c.l.b16 %v887
        %v1033 = vunpack.c.l.b16 %v888
        %v1034 = vunpack.c.l.b16 %v889
        %v1035 = vunpack.c.l.b16 %v890
        %v1036 = vunpack.c.l.b16 %v891
        %v1037 = vpack.c.b16 %v1022, %v1021
        %v1038 = vpack.c.b16 %v1024, %v1023
        %v1039 = vpack.c.b16 %v1026, %v1025
        %v1040 = vpack.c.b16 %v1028, %v1027
        %v1041 = vpack.c.b16 %v1030, %v1029
        %v1042 = vpack.c.b16 %v1032, %v1031
        %v1043 = vpack.c.b16 %v1034, %v1033
        %v1044 = vpack.c.b16 %v1036, %v1035
        %1053 = vmatpush.bf16.msra.mxu0 %v923
        %1054 = vmatpush.bf16.msra.mxu0 %v921
        %1055 = vmatpush.bf16.msra.mxu0 %v919
        %1056 = vmatpush.bf16.msra.mxu0 %v917
        %1057 = vmatpush.bf16.msra.mxu0 %v915
        %1058 = vmatpush.bf16.msra.mxu0 %v913
        %1059 = vmatpush.bf16.msra.mxu0 %v911
        %1060 = vmatpush.bf16.msra.mxu0 %v909
        %1061 = vmatmul.bf16.gmra.mxu0 %v1037
        %v1062 = vpop.f32.mrf.mxu0
        %v1063 = vadd.f32 %v928, %v1062
        %v1064 = vpop.f32.mrf.mxu0
        %v1065 = vadd.f32 %v933, %v1064
        %1066 = vmatmul.bf16.gmra.mxu0 %v1038
        %v1067 = vpop.f32.mrf.mxu0
        %v1068 = vadd.f32 %v938, %v1067
        %v1069 = vpop.f32.mrf.mxu0
        %v1070 = vadd.f32 %v943, %v1069
        %1071 = vmatmul.bf16.gmra.mxu0 %v1039
        %v1072 = vpop.f32.mrf.mxu0
        %v1073 = vadd.f32 %v948, %v1072
        %v1074 = vpop.f32.mrf.mxu0
        %v1075 = vadd.f32 %v953, %v1074
        %1076 = vmatmul.bf16.gmra.mxu0 %v1040
        %v1077 = vpop.f32.mrf.mxu0
        %v1078 = vadd.f32 %v958, %v1077
        %v1079 = vpop.f32.mrf.mxu0
        %v1080 = vadd.f32 %v963, %v1079
        %1081 = vmatmul.bf16.gmra.mxu0 %v1041
        %v1082 = vpop.f32.mrf.mxu0
        %v1083 = vadd.f32 %v968, %v1082
        %v1084 = vpop.f32.mrf.mxu0
        %v1085 = vadd.f32 %v973, %v1084
        %1086 = vmatmul.bf16.gmra.mxu0 %v1042
        %v1087 = vpop.f32.mrf.mxu0
        %v1088 = vadd.f32 %v978, %v1087
        %v1089 = vpop.f32.mrf.mxu0
        %v1090 = vadd.f32 %v983, %v1089
        %1091 = vmatmul.bf16.gmra.mxu0 %v1043
        %v1092 = vpop.f32.mrf.mxu0
        %v1093 = vadd.f32 %v988, %v1092
        %v1094 = vpop.f32.mrf.mxu0
        %v1095 = vadd.f32 %v993, %v1094
        %1096 = vmatmul.bf16.gmra.mxu0 %v1044
        %v1097 = vpop.f32.mrf.mxu0
        %v1098 = vadd.f32 %v998, %v1097
        %v1099 = vpop.f32.mrf.mxu0
        %v1100 = vadd.f32 %v1003, %v1099
        %1101 = vdwg.mxu0
        %1102 = vmatpush.bf16.msra.mxu0 %v924
        %1103 = vmatpush.bf16.msra.mxu0 %v922
        %1104 = vmatpush.bf16.msra.mxu0 %v920
        %1105 = vmatpush.bf16.msra.mxu0 %v918
        %1106 = vmatpush.bf16.msra.mxu0 %v916
        %1107 = vmatpush.bf16.msra.mxu0 %v914
        %1108 = vmatpush.bf16.msra.mxu0 %v912
        %1109 = vmatpush.bf16.msra.mxu0 %v910
        %1110 = vmatmul.bf16.gmra.mxu0 %v1037
        %v1111 = vpop.f32.mrf.mxu0
        %v1112 = vadd.f32 %v928, %v1111
        %v1113 = vpop.f32.mrf.mxu0
        %v1114 = vadd.f32 %v933, %v1113
        %1115 = vmatmul.bf16.gmra.mxu0 %v1038
        %v1116 = vpop.f32.mrf.mxu0
        %v1117 = vadd.f32 %v938, %v1116
        %v1118 = vpop.f32.mrf.mxu0
        %v1119 = vadd.f32 %v943, %v1118
        %1120 = vmatmul.bf16.gmra.mxu0 %v1039
        %v1121 = vpop.f32.mrf.mxu0
        %v1122 = vadd.f32 %v948, %v1121
        %v1123 = vpop.f32.mrf.mxu0
        %v1124 = vadd.f32 %v953, %v1123
        %1125 = vmatmul.bf16.gmra.mxu0 %v1040
        %v1126 = vpop.f32.mrf.mxu0
        %v1127 = vadd.f32 %v958, %v1126
        %v1128 = vpop.f32.mrf.mxu0
        %v1129 = vadd.f32 %v963, %v1128
        %1130 = vmatmul.bf16.gmra.mxu0 %v1041
        %v1131 = vpop.f32.mrf.mxu0
        %v1132 = vadd.f32 %v968, %v1131
        %v1133 = vpop.f32.mrf.mxu0
        %v1134 = vadd.f32 %v973, %v1133
        %1135 = vmatmul.bf16.gmra.mxu0 %v1042
        %v1136 = vpop.f32.mrf.mxu0
        %v1137 = vadd.f32 %v978, %v1136
        %v1138 = vpop.f32.mrf.mxu0
        %v1139 = vadd.f32 %v983, %v1138
        %1140 = vmatmul.bf16.gmra.mxu0 %v1043
        %v1141 = vpop.f32.mrf.mxu0
        %v1142 = vadd.f32 %v988, %v1141
        %v1143 = vpop.f32.mrf.mxu0
        %v1144 = vadd.f32 %v993, %v1143
        %1145 = vmatmul.bf16.gmra.mxu0 %v1044
        %v1146 = vpop.f32.mrf.mxu0
        %v1147 = vadd.f32 %v998, %v1146
        %v1148 = vpop.f32.mrf.mxu0
        %v1149 = vadd.f32 %v1003, %v1148
        %1150 = vdwg.mxu0
        %v1151 = vmax.f32 %v1063, 0.0
        %v1152 = vmax.f32 %v1112, 0.0
        %v1153 = vmax.f32 %v1065, 0.0
        %v1154 = vmax.f32 %v1114, 0.0
        %v1155 = vmax.f32 %v1068, 0.0
        %v1156 = vmax.f32 %v1117, 0.0
        %v1157 = vmax.f32 %v1070, 0.0
        %v1158 = vmax.f32 %v1119, 0.0
        %v1159 = vmax.f32 %v1073, 0.0
        %v1160 = vmax.f32 %v1122, 0.0
        %v1161 = vmax.f32 %v1075, 0.0
        %v1162 = vmax.f32 %v1124, 0.0
        %v1163 = vmax.f32 %v1078, 0.0
        %v1164 = vmax.f32 %v1127, 0.0
        %v1165 = vmax.f32 %v1080, 0.0
        %v1166 = vmax.f32 %v1129, 0.0
        %v1167 = vmax.f32 %v1083, 0.0
        %v1168 = vmax.f32 %v1132, 0.0
        %v1169 = vmax.f32 %v1085, 0.0
        %v1170 = vmax.f32 %v1134, 0.0
        %v1171 = vmax.f32 %v1088, 0.0
        %v1172 = vmax.f32 %v1137, 0.0
        %v1173 = vmax.f32 %v1090, 0.0
        %v1174 = vmax.f32 %v1139, 0.0
        %v1175 = vmax.f32 %v1093, 0.0
        %v1176 = vmax.f32 %v1142, 0.0
        %v1177 = vmax.f32 %v1095, 0.0
        %v1178 = vmax.f32 %v1144, 0.0
        %v1179 = vmax.f32 %v1098, 0.0
        %v1180 = vmax.f32 %v1147, 0.0
        %v1181 = vmax.f32 %v1100, 0.0
        %v1182 = vmax.f32 %v1149, 0.0
        %v1183 = vld [vmem:[%s5] sm:$0xf]
        %v1184 = vld [vmem:[%s6] sm:$0xff]
        %v1185 = vpack.c.bf16 %v1153, %v1151
        %v1186 = vpack.c.bf16 %v1154, %v1152
        %v1187 = vpack.c.bf16 %v1157, %v1155
        %v1188 = vpack.c.bf16 %v1158, %v1156
        %v1189 = vpack.c.bf16 %v1161, %v1159
        %v1190 = vpack.c.bf16 %v1162, %v1160
        %v1191 = vpack.c.bf16 %v1165, %v1163
        %v1192 = vpack.c.bf16 %v1166, %v1164
        %v1193 = vpack.c.bf16 %v1169, %v1167
        %v1194 = vpack.c.bf16 %v1170, %v1168
        %v1195 = vpack.c.bf16 %v1173, %v1171
        %v1196 = vpack.c.bf16 %v1174, %v1172
        %v1197 = vpack.c.bf16 %v1177, %v1175
        %v1198 = vpack.c.bf16 %v1178, %v1176
        %v1199 = vpack.c.bf16 %v1181, %v1179
        %v1200 = vpack.c.bf16 %v1182, %v1180
        %1202 = vset.pattern.permute.xlu0 0
        %1203 = vperm.xlu0 %1202, %v1184
        %v1204 = vpop.permute.xlu0 %1203
        %1206 = vmatpush.bf16.msra.mxu0 %v1199
        %1207 = vmatpush.bf16.msra.mxu0 %v1197
        %1208 = vmatpush.bf16.msra.mxu0 %v1195
        %1209 = vmatpush.bf16.msra.mxu0 %v1193
        %1210 = vmatpush.bf16.msra.mxu0 %v1191
        %1211 = vmatpush.bf16.msra.mxu0 %v1189
        %1212 = vmatpush.bf16.msra.mxu0 %v1187
        %1213 = vmatpush.bf16.msra.mxu0 %v1185
        %1214 = vmatmul.bf16.gmra.mxu0 %v1183
        %v1215 = vpop.f32.mrf.mxu0
        %v1216 = vadd.f32 %v1204, %v1215
        %v1217 = vpop.f32.mrf.mxu0
        %1218 = vdwg.mxu0
        %1219 = vmatpush.bf16.msra.mxu0 %v1200
        %1220 = vmatpush.bf16.msra.mxu0 %v1198
        %1221 = vmatpush.bf16.msra.mxu0 %v1196
        %1222 = vmatpush.bf16.msra.mxu0 %v1194
        %1223 = vmatpush.bf16.msra.mxu0 %v1192
        %1224 = vmatpush.bf16.msra.mxu0 %v1190
        %1225 = vmatpush.bf16.msra.mxu0 %v1188
        %1226 = vmatpush.bf16.msra.mxu0 %v1186
        %1227 = vmatmul.bf16.gmra.mxu0 %v1183
        %v1228 = vpop.f32.mrf.mxu0
        %v1229 = vadd.f32 %v1204, %v1228
        %v1230 = vpop.f32.mrf.mxu0
        %1231 = vdwg.mxu0
        %v1232 = vxor.u32 %v1216, 2147483648
        %v1233 = vxor.u32 %v1229, 2147483648
        %v1234 = vmul.f32 %v1232, 1.442695
        %v1235 = vpow.pop %v1234
        %v1236 = vmul.f32 %v1233, 1.442695
        %v1237 = vpow.pop %v1236
        %v1238 = vadd.f32 %v1235, 1.0
        %v1239 = vadd.f32 %v1237, 1.0
        %v1240 = vrcp.pop %v1238
        %v1241 = vmul.f32 %v1238, %v1240
        %v1242 = vsub.f32 1.0, %v1241
        %v1243 = vmul.f32 %v1240, %v1242
        %v1244 = vadd.f32 %v1240, %v1243
        %vm1245 = vweird.f32 %v1238
        %vm1246 = vweird.f32 %v1240
        %vm1247 = vmor %vm1245, %vm1246
        %v1248 = vsel %vm1247, %v1240, %v1244
        %v1249 = vand.u32 2147483647, %v1238
        %vm1250 = vcmp.eq.f32.partialorder %v1249, 8.507059e+37
        %v1251 = vand.u32 %v1238, 2147483648
        %v1252 = vor.u32 1.1754944e-38, %v1251
        %v1253 = vsel %vm1250, %v1252, %v1248
        %v1254 = vmul.f32 1.0, %v1253
        %v1255 = vrcp.pop %v1239
        %v1256 = vmul.f32 %v1239, %v1255
        %v1257 = vsub.f32 1.0, %v1256
        %v1258 = vmul.f32 %v1255, %v1257
        %v1259 = vadd.f32 %v1255, %v1258
        %vm1260 = vweird.f32 %v1239
        %vm1261 = vweird.f32 %v1255
        %vm1262 = vmor %vm1260, %vm1261
        %v1263 = vsel %vm1262, %v1255, %v1259
        %v1264 = vand.u32 2147483647, %v1239
        %vm1265 = vcmp.eq.f32.partialorder %v1264, 8.507059e+37
        %v1266 = vand.u32 %v1239, 2147483648
        %v1267 = vor.u32 1.1754944e-38, %v1266
        %v1268 = vsel %vm1265, %v1267, %v1263
        %v1269 = vmul.f32 1.0, %v1268
        %1270 = vst [vmem:[%s272] sm:$0xff] %v1254
        %1271 = vst [vmem:[%s272 + $0x8] sm:$0xff] %v1269
        %s1272 = sand.u32 %s181, 1
        %s1273 = scalar_lea.sflag [#allocation3], %s1272
        %s1274 = sand.u32 %s181, 1
        %s1275 = smul.addr %s1274, 16
        %s1276 = scalar_lea.vmem [#allocation2], %s1275
        // Predicated region
        $region49: #{tpu_custom_call.1} parent=47 // pred_check
          %p1277 = pneg %p191
        $region50: #{tpu_custom_call.1} parent=47 // pred_check_branch
          %1279 = sbr.rel (%p1277) target = $region52
        $region51: #{tpu_custom_call.1} parent=47 // pred_region
          %s1280 = smul.u32 2, %s21
          %1282 = vsyncadd %s1273, 0
          %s1283 = smul.addr %s1280, 8
          %s1284 = scalar_lea.hbm %s7, %s1283
          %s1286 = sshll.u32 %s1276, 4
          %s1287 = int_to_ptr.vmem [resolvable:$true] %s1286
          %s1288 = sshll.u32 %s1284, 4
          %s1289 = int_to_ptr.hbm [resolvable:$true] %s1288
          %1291 = dma.vmem_to_hbm [thread:$0]  %s1287, 256, %s1289, %s1273
        $region52: #{tpu_custom_call.1} parent=47 // pred_fallthru
          _
      $region48: #{tpu_custom_call.1} parent=5 // pred_fallthru
        _
      %p1292 = scmp.le.s32.totalorder 2, %s16
      // Predicated region
      $region53: #{tpu_custom_call.1} parent=5 // pred_check
        %p1293 = pneg %p1292
      $region54: #{tpu_custom_call.1} parent=5 // pred_check_branch
        %1295 = sbr.rel (%p1293) target = $region56
      $region55: #{tpu_custom_call.1} parent=5 // pred_region
        %s1296 = ssub.s32 %s16, 2
        // Predicated region
        $region57: #{tpu_custom_call.1} parent=55 // pred_check
          %p1297 = pneg %p197
        $region58: #{tpu_custom_call.1} parent=55 // pred_check_branch
          %1299 = sbr.rel (%p1297) target = $region60
        $region59: #{tpu_custom_call.1} parent=55 // pred_region
          %s1300 = sand.u32 %s182, 1
          %s1301 = scalar_lea.sflag [#allocation3], %s1300
          %s1302 = sand.u32 %s182, 1
          %s1303 = smul.addr %s1302, 16
          %s1304 = scalar_lea.vmem [#allocation2], %s1303
          %1306 = dma.done %s1301, 256
        $region60: #{tpu_custom_call.1} parent=55 // pred_fallthru
          _
      $region56: #{tpu_custom_call.1} parent=5 // pred_fallthru
        _
    $region6: #{tpu_custom_call.1} parent=1 // loop_footer
      %s20 = sadd.s32 1, %s16
    $region7: #{tpu_custom_call.1} parent=1 // loop_footer_branch
      %15 = sbr.rel target = $region3
    $region8: #{tpu_custom_call.1} parent=1 // loop_exit
      _
    %1307 = vsyncpa [#allocation3], 1
    %s1308 = scalar_lea.sflag [#allocation3], 1
    %1309 = vsyncpa %s1308, 1

</llo_original>
